<compile_context>
chip_gen: v6e
topology: v6e:2x2x1
jax: 0.10.0
libtpu: 0.0.40
codegen_flags: <defaults>
</compile_context>

<pallas_src>
import functools

import jax
import jax.numpy as jnp
from jax import lax
from jax.experimental import pallas as pl
from jax.experimental.pallas import tpu as pltpu

ALPHA = 7.75
NS = 24
GAMMA_OBJ = 0.3  # present in __init__, unused in forward (matches PyTorch)

LANES = 128
SUBLANES = 8
_MAX_SUBLANES_PER_STEP = 256  # TB*TS cap: ~2.2 MB of f32 inputs per grid step


def _cdiv(a, b):
    return -(-a // b)


def _round_up(x, m):
    return _cdiv(x, m) * m


def _largest_divisor_leq(n, cap):
    cap = max(1, min(n, cap))
    for d in range(cap, 0, -1):
        if n % d == 0:
            return d
    return 1


def _wpod_kernel(pred_ref, txy_ref, mask_ref, out_ref, *, W, HW, TS):
    """pred_ref: (TB,8,TS,128)  txy_ref: (TB,8,TS,128)  mask_ref: (TB,TS,128)
    out_ref: (1,8,128) per-batch-block partial-sum slab (resident across ss)."""
    ss = pl.program_id(1)

    @pl.when(ss == 0)
    def _init():
        out_ref[...] = jnp.zeros_like(out_ref)

    inv_a = 1.0 / ALPHA
    inv_an = (1.0 / ALPHA) * (1.0 / NS)
    eps = 1e-10

    pred = pred_ref[...]   # (TB, 8, TS, 128) f32
    txy = txy_ref[...]     # (TB, 8, TS, 128) f32
    mask = mask_ref[...]   # (TB, TS, 128)    f32

    # ---- rebuild (m, n, valid) planes for this spatial tile (no HBM traffic) ----
    row = lax.broadcasted_iota(jnp.int32, (TS, LANES), 0)
    col = lax.broadcasted_iota(jnp.int32, (TS, LANES), 1)
    p = (ss * TS + row) * LANES + col                     # global flat pixel index
    m_i = jnp.floor(p.astype(jnp.float32) * (1.0 / W)).astype(jnp.int32)
    m_i = jnp.where(m_i * W > p, m_i - 1, m_i)            # exact //W via +-1 fixup
    m_i = jnp.where((m_i + 1) * W <= p, m_i + 1, m_i)
    n_i = p - m_i * W                                     # exact % W
    valid = (p < HW).astype(jnp.float32)                  # zero out padded pixels
    ax_base = n_i.astype(jnp.float32) * inv_a             # arange(N)/alpha term
    ay_base = m_i.astype(jnp.float32) * inv_a             # arange(M)/alpha term

    # ---- affine branch -----------------------------------------------------
    v1 = pred[:, 0]
    v2 = pred[:, 1]
    v3 = jnp.maximum(pred[:, 2], 0.0)
    v4 = pred[:, 3]
    v5 = pred[:, 4]
    v6 = jnp.maximum(pred[:, 5], 0.0)
    v7 = pred[:, 6]
    v8 = pred[:, 7]

    # hoisted halves; corners q = (-.5,-.5),(.5,-.5),(.5,.5),(-.5,.5) become +-
    hx3 = 0.5 * v3
    hx4 = 0.5 * v4
    hy5 = 0.5 * v5
    hy6 = 0.5 * v6
    tq_x = (v7 - hx3 - hx4, v7 + hx3 - hx4, v7 + hx3 + hx4, v7 - hx3 + hx4)
    tq_y = (v8 - hy5 - hy6, v8 + hy5 - hy6, v8 + hy5 + hy6, v8 - hy5 + hy6)

    f_affine = jnp.zeros_like(mask)
    for i in range(4):  # unrolled at trace time
        ap_x = inv_an * txy[:, 2 * i] - ax_base
        ap_y = inv_an * txy[:, 2 * i + 1] - ay_base
        f_affine = f_affine + jnp.abs(tq_x[i] - ap_x) + jnp.abs(tq_y[i] - ap_y)

    # ---- probability branch (merged logs: 2 EUP pushes/pixel) ---------------
    one_m = 1.0 - mask
    f_probs = -(mask * jnp.log((v1 + eps) * (1.0 - v2 + eps))
                + one_m * jnp.log((1.0 - v1 + eps) * (v2 + eps)))

    contrib = mask * f_affine + valid * f_probs           # (TB, TS, 128)

    # ---- vector accumulation: fold to (8,128) with VALU-only adds -----------
    tb, ts = contrib.shape[0], contrib.shape[1]
    part = contrib.reshape(tb * ts // SUBLANES, SUBLANES, LANES).sum(axis=0)
    out_ref[...] += part.reshape(1, SUBLANES, LANES)


@jax.jit
def wpod_loss(pred, target, object_mask):
    """pred: (B,8,H,W), target: (B,H,W,4,2), object_mask: (B,H,W) -> scalar loss."""
    B, C, H, W = pred.shape
    assert C == 8
    assert target.shape == (B, H, W, 4, 2)
    assert object_mask.shape == (B, H, W)
    P = H * W
    assert P < (1 << 24)  # flat index math kept exact

    f32 = jnp.float32
    pred = pred.astype(f32)
    target = target.astype(f32)
    object_mask = object_mask.astype(f32)

    # ---- tile selection: lane-dense flat spatial layout + batch folding ------
    sp_min = _round_up(_cdiv(P, LANES), SUBLANES)  # sublanes covering one image
    if sp_min <= _MAX_SUBLANES_PER_STEP:
        TS, SS = sp_min, 1
        tb_budget = _MAX_SUBLANES_PER_STEP // TS
        tb_cap = max(1, B // 2)          # keep >=2 batch blocks for v7x megacore
        TB = _largest_divisor_leq(B, min(tb_budget, tb_cap))
    else:
        TB = 1
        TS = _MAX_SUBLANES_PER_STEP
        SS = _cdiv(sp_min, TS)
    Sp = TS * SS
    Pp = Sp * LANES
    BB = B // TB

    # ---- lane-dense reshapes; one fused transpose for target; pad only if needed
    pred_flat = pred.reshape(B, 8, P)
    txy_flat = jnp.transpose(target.reshape(B, P, 8), (0, 2, 1))   # (B, 8, P)
    mask_flat = object_mask.reshape(B, P)
    if Pp != P:
        padw = Pp - P
        pred_flat = jnp.pad(pred_flat, ((0, 0), (0, 0), (0, padw)))
        txy_flat = jnp.pad(txy_flat, ((0, 0), (0, 0), (0, padw)))
        mask_flat = jnp.pad(mask_flat, ((0, 0), (0, padw)))
    pred_l = pred_flat.reshape(B, 8, Sp, LANES)
    txy_l = txy_flat.reshape(B, 8, Sp, LANES)
    mask_l = mask_flat.reshape(B, Sp, LANES)

    kernel = functools.partial(_wpod_kernel, W=W, HW=P, TS=TS)

    partials = pl.pallas_call(
        kernel,
        out_shape=jax.ShapeDtypeStruct((BB, SUBLANES, LANES), f32),
        grid_spec=pltpu.PrefetchScalarGridSpec(
            num_scalar_prefetch=0,
            grid=(BB, SS),
            in_specs=[
                pl.BlockSpec((TB, 8, TS, LANES), lambda bb, ss: (bb, 0, ss, 0)),
                pl.BlockSpec((TB, 8, TS, LANES), lambda bb, ss: (bb, 0, ss, 0)),
                pl.BlockSpec((TB, TS, LANES), lambda bb, ss: (bb, ss, 0)),
            ],
            out_specs=pl.BlockSpec((1, SUBLANES, LANES), lambda bb, ss: (bb, 0, 0)),
        ),
        compiler_params=pltpu.CompilerParams(
            dimension_semantics=("parallel", "arbitrary"),
            vmem_limit_bytes=32 * 1024 * 1024,
        ),
    )(pred_l, txy_l, mask_l)

    return jnp.sum(partials)


def _wpod_loss_ref(pred, target, object_mask):
    """Pure-JAX reference, mirrors the PyTorch module."""
    B, _, H, W = pred.shape
    v = [pred[:, i] for i in range(8)]
    v3 = jnp.maximum(v[2], 0.0)
    v6 = jnp.maximum(v[5], 0.0)
    qx = (-0.5, 0.5, 0.5, -0.5)
    qy = (-0.5, -0.5, 0.5, 0.5)
    n_idx = jnp.arange(W, dtype=jnp.float32)[None, None, :]
    m_idx = jnp.arange(H, dtype=jnp.float32)[None, :, None]
    inv_a = 1.0 / ALPHA
    inv_an = (1.0 / ALPHA) * (1.0 / NS)
    f_affine = jnp.zeros((B, H, W), jnp.float32)
    for i in range(4):
        tq_x = v3 * qx[i] + v[3] * qy[i] + v[6]
        tq_y = v[4] * qx[i] + v6 * qy[i] + v[7]
        ap_x = inv_an * target[..., i, 0] - n_idx * inv_a
        ap_y = inv_an * target[..., i, 1] - m_idx * inv_a
        f_affine = f_affine + jnp.abs(tq_x - ap_x) + jnp.abs(tq_y - ap_y)
    eps = 1e-10
    ll = lambda y, pp: -y * jnp.log(pp + eps) - (1 - y) * jnp.log(1 - pp + eps)
    f_probs = ll(object_mask, v[0]) + ll(1 - object_mask, v[1])
    return jnp.sum(object_mask * f_affine + f_probs)


if __name__ == "__main__":
    key = jax.random.PRNGKey(0)
    B, H, W = 2, 16, 16
    k1, k2, k3, k4 = jax.random.split(key, 4)

    # channels 0/1 feed log(): keep them strictly in (0,1), as the module assumes
    probs = jax.random.uniform(k1, (B, 2, H, W), minval=0.05, maxval=0.95)
    affine = jax.random.normal(k2, (B, 6, H, W))
    pred = jnp.concatenate([probs, affine], axis=1).astype(jnp.float32)

    target = jax.random.uniform(
        k3, (B, H, W, 4, 2), minval=0.0, maxval=float(NS * W)
    ).astype(jnp.float32)
    object_mask = (jax.random.uniform(k4, (B, H, W)) > 0.5).astype(jnp.float32)

    loss = wpod_loss(pred, target, object_mask)
    jax.block_until_ready(loss)

    ref = _wpod_loss_ref(pred, target, object_mask)
    assert bool(jnp.isfinite(loss)), "non-finite loss"
    assert bool(jnp.abs(loss - ref) <= 1e-4 * jnp.abs(ref) + 1e-2), (loss, ref)

    print("KERNEL_OK")
</pallas_src>

<mosaic_0001>
module attributes {stable_mosaic.version = 11 : i64} {
  func.func @_wpod_kernel(%arg0: i32, %arg1: i32, %arg2: memref<1x8x8x128xf32, #tpu.memory_space<vmem>>, %arg3: memref<1x8x8x128xf32, #tpu.memory_space<vmem>>, %arg4: memref<1x8x128xf32, #tpu.memory_space<vmem>>, %arg5: memref<1x8x128xf32, #tpu.memory_space<vmem>>) attributes {dimension_semantics = [#tpu.dimension_semantics<parallel>, #tpu.dimension_semantics<arbitrary>], iteration_bounds = array<i64: 2, 1>, scalar_prefetch = 0 : i64, scratch_operands = 0 : i64, tpu.core_type = #tpu.core_type<tc>, window_params = [{transform_indices = @transform_0, window_bounds = array<i64: 1, 8, 8, 128>}, {transform_indices = @transform_1, window_bounds = array<i64: 1, 8, 8, 128>}, {transform_indices = @transform_2, window_bounds = array<i64: 1, 8, 128>}, {transform_indices = @transform_3, window_bounds = array<i64: 1, 8, 128>}]} {
    %c0_i32 = arith.constant 0 : i32
    %0 = arith.cmpi eq, %arg1, %c0_i32 : i32
    %1 = arith.extui %0 : i1 to i32
    %c0_i32_0 = arith.constant 0 : i32
    %2 = arith.cmpi ne, %1, %c0_i32_0 : i32
    scf.if %2 {
      %cst_47 = arith.constant 0.000000e+00 : f32
      %195 = vector.broadcast %cst_47 : f32 to vector<1x8x128xf32>
      %c0_48 = arith.constant 0 : index
      %c0_49 = arith.constant 0 : index
      %c0_50 = arith.constant 0 : index
      %196 = vector.load %arg5[%c0_48, %c0_49, %c0_50] : memref<1x8x128xf32, #tpu.memory_space<vmem>>, vector<1x8x128xf32>
      tpu.vector_store %arg5[%c0_48, %c0_49, %c0_50], %195 {strides = array<i32>} : memref<1x8x128xf32, #tpu.memory_space<vmem>>, vector<1x8x128xf32>,
    } else {
    }
    %c0 = arith.constant 0 : index
    %c0_1 = arith.constant 0 : index
    %c0_2 = arith.constant 0 : index
    %c0_3 = arith.constant 0 : index
    %3 = vector.load %arg2[%c0, %c0_1, %c0_2, %c0_3] : memref<1x8x8x128xf32, #tpu.memory_space<vmem>>, vector<1x8x8x128xf32>
    %c0_4 = arith.constant 0 : index
    %c0_5 = arith.constant 0 : index
    %c0_6 = arith.constant 0 : index
    %c0_7 = arith.constant 0 : index
    %4 = vector.load %arg3[%c0_4, %c0_5, %c0_6, %c0_7] : memref<1x8x8x128xf32, #tpu.memory_space<vmem>>, vector<1x8x8x128xf32>
    %c0_8 = arith.constant 0 : index
    %c0_9 = arith.constant 0 : index
    %c0_10 = arith.constant 0 : index
    %5 = vector.load %arg4[%c0_8, %c0_9, %c0_10] : memref<1x8x128xf32, #tpu.memory_space<vmem>>, vector<1x8x128xf32>
    %6 = tpu.iota {dimensions = array<i32: 0>} : vector<8x128xi32>
    %7 = tpu.iota {dimensions = array<i32: 1>} : vector<8x128xi32>
    %c8_i32 = arith.constant 8 : i32
    %8 = arith.muli %arg1, %c8_i32 : i32
    %9 = vector.broadcast %8 : i32 to vector<8x128xi32>
    %10 = arith.addi %9, %6 : vector<8x128xi32>
    %c128_i32 = arith.constant 128 : i32
    %11 = vector.broadcast %c128_i32 : i32 to vector<8x128xi32>
    %12 = arith.muli %10, %11 : vector<8x128xi32>
    %13 = arith.addi %12, %7 : vector<8x128xi32>
    %14 = arith.sitofp %13 : vector<8x128xi32> to vector<8x128xf32>
    %cst = arith.constant 6.250000e-02 : f32
    %15 = vector.broadcast %cst : f32 to vector<8x128xf32>
    %16 = arith.mulf %14, %15 : vector<8x128xf32>
    %17 = math.floor %16 : vector<8x128xf32>
    %18 = arith.fptosi %17 : vector<8x128xf32> to vector<8x128xi32>
    %c16_i32 = arith.constant 16 : i32
    %19 = vector.broadcast %c16_i32 : i32 to vector<8x128xi32>
    %20 = arith.muli %18, %19 : vector<8x128xi32>
    %21 = arith.cmpi sgt, %20, %13 : vector<8x128xi32>
    %c1_i32 = arith.constant 1 : i32
    %22 = vector.broadcast %c1_i32 : i32 to vector<8x128xi32>
    %23 = arith.subi %18, %22 : vector<8x128xi32>
    %24 = arith.select %21, %23, %18 : vector<8x128xi1>, vector<8x128xi32>
    %c1_i32_11 = arith.constant 1 : i32
    %25 = vector.broadcast %c1_i32_11 : i32 to vector<8x128xi32>
    %26 = arith.addi %24, %25 : vector<8x128xi32>
    %c16_i32_12 = arith.constant 16 : i32
    %27 = vector.broadcast %c16_i32_12 : i32 to vector<8x128xi32>
    %28 = arith.muli %26, %27 : vector<8x128xi32>
    %29 = arith.cmpi sle, %28, %13 : vector<8x128xi32>
    %c1_i32_13 = arith.constant 1 : i32
    %30 = vector.broadcast %c1_i32_13 : i32 to vector<8x128xi32>
    %31 = arith.addi %24, %30 : vector<8x128xi32>
    %32 = arith.select %29, %31, %24 : vector<8x128xi1>, vector<8x128xi32>
    %c16_i32_14 = arith.constant 16 : i32
    %33 = vector.broadcast %c16_i32_14 : i32 to vector<8x128xi32>
    %34 = arith.muli %32, %33 : vector<8x128xi32>
    %35 = arith.subi %13, %34 : vector<8x128xi32>
    %c256_i32 = arith.constant 256 : i32
    %36 = vector.broadcast %c256_i32 : i32 to vector<8x128xi32>
    %37 = arith.cmpi slt, %13, %36 : vector<8x128xi32>
    %38 = arith.extui %37 : vector<8x128xi1> to vector<8x128xi32>
    %39 = arith.sitofp %38 : vector<8x128xi32> to vector<8x128xf32>
    %40 = arith.sitofp %35 : vector<8x128xi32> to vector<8x128xf32>
    %cst_15 = arith.constant 0.129032254 : f32
    %41 = vector.broadcast %cst_15 : f32 to vector<8x128xf32>
    %42 = arith.mulf %40, %41 : vector<8x128xf32>
    %43 = arith.sitofp %32 : vector<8x128xi32> to vector<8x128xf32>
    %cst_16 = arith.constant 0.129032254 : f32
    %44 = vector.broadcast %cst_16 : f32 to vector<8x128xf32>
    %45 = arith.mulf %43, %44 : vector<8x128xf32>
    %46 = vector.extract_strided_slice %3 {offsets = [0, 0, 0, 0], sizes = [1, 1, 8, 128], strides = [1, 1, 1, 1]} : vector<1x8x8x128xf32> to vector<1x1x8x128xf32>
    %47 = vector.shape_cast %46 : vector<1x1x8x128xf32> to vector<1x8x128xf32>
    %48 = vector.extract_strided_slice %3 {offsets = [0, 1, 0, 0], sizes = [1, 1, 8, 128], strides = [1, 1, 1, 1]} : vector<1x8x8x128xf32> to vector<1x1x8x128xf32>
    %49 = vector.shape_cast %48 : vector<1x1x8x128xf32> to vector<1x8x128xf32>
    %50 = vector.extract_strided_slice %3 {offsets = [0, 2, 0, 0], sizes = [1, 1, 8, 128], strides = [1, 1, 1, 1]} : vector<1x8x8x128xf32> to vector<1x1x8x128xf32>
    %51 = vector.shape_cast %50 : vector<1x1x8x128xf32> to vector<1x8x128xf32>
    %cst_17 = arith.constant 0.000000e+00 : f32
    %52 = vector.broadcast %cst_17 : f32 to vector<1x8x128xf32>
    %53 = arith.maximumf %51, %52 : vector<1x8x128xf32>
    %54 = vector.extract_strided_slice %3 {offsets = [0, 3, 0, 0], sizes = [1, 1, 8, 128], strides = [1, 1, 1, 1]} : vector<1x8x8x128xf32> to vector<1x1x8x128xf32>
    %55 = vector.shape_cast %54 : vector<1x1x8x128xf32> to vector<1x8x128xf32>
    %56 = vector.extract_strided_slice %3 {offsets = [0, 4, 0, 0], sizes = [1, 1, 8, 128], strides = [1, 1, 1, 1]} : vector<1x8x8x128xf32> to vector<1x1x8x128xf32>
    %57 = vector.shape_cast %56 : vector<1x1x8x128xf32> to vector<1x8x128xf32>
    %58 = vector.extract_strided_slice %3 {offsets = [0, 5, 0, 0], sizes = [1, 1, 8, 128], strides = [1, 1, 1, 1]} : vector<1x8x8x128xf32> to vector<1x1x8x128xf32>
    %59 = vector.shape_cast %58 : vector<1x1x8x128xf32> to vector<1x8x128xf32>
    %cst_18 = arith.constant 0.000000e+00 : f32
    %60 = vector.broadcast %cst_18 : f32 to vector<1x8x128xf32>
    %61 = arith.maximumf %59, %60 : vector<1x8x128xf32>
    %62 = vector.extract_strided_slice %3 {offsets = [0, 6, 0, 0], sizes = [1, 1, 8, 128], strides = [1, 1, 1, 1]} : vector<1x8x8x128xf32> to vector<1x1x8x128xf32>
    %63 = vector.shape_cast %62 : vector<1x1x8x128xf32> to vector<1x8x128xf32>
    %64 = vector.extract_strided_slice %3 {offsets = [0, 7, 0, 0], sizes = [1, 1, 8, 128], strides = [1, 1, 1, 1]} : vector<1x8x8x128xf32> to vector<1x1x8x128xf32>
    %65 = vector.shape_cast %64 : vector<1x1x8x128xf32> to vector<1x8x128xf32>
    %cst_19 = arith.constant 5.000000e-01 : f32
    %66 = vector.broadcast %cst_19 : f32 to vector<1x8x128xf32>
    %67 = arith.mulf %66, %53 : vector<1x8x128xf32>
    %cst_20 = arith.constant 5.000000e-01 : f32
    %68 = vector.broadcast %cst_20 : f32 to vector<1x8x128xf32>
    %69 = arith.mulf %68, %55 : vector<1x8x128xf32>
    %cst_21 = arith.constant 5.000000e-01 : f32
    %70 = vector.broadcast %cst_21 : f32 to vector<1x8x128xf32>
    %71 = arith.mulf %70, %57 : vector<1x8x128xf32>
    %cst_22 = arith.constant 5.000000e-01 : f32
    %72 = vector.broadcast %cst_22 : f32 to vector<1x8x128xf32>
    %73 = arith.mulf %72, %61 : vector<1x8x128xf32>
    %74 = arith.subf %63, %67 : vector<1x8x128xf32>
    %75 = arith.subf %74, %69 : vector<1x8x128xf32>
    %76 = arith.addf %63, %67 : vector<1x8x128xf32>
    %77 = arith.subf %76, %69 : vector<1x8x128xf32>
    %78 = arith.addf %63, %67 : vector<1x8x128xf32>
    %79 = arith.addf %78, %69 : vector<1x8x128xf32>
    %80 = arith.subf %63, %67 : vector<1x8x128xf32>
    %81 = arith.addf %80, %69 : vector<1x8x128xf32>
    %82 = arith.subf %65, %71 : vector<1x8x128xf32>
    %83 = arith.subf %82, %73 : vector<1x8x128xf32>
    %84 = arith.addf %65, %71 : vector<1x8x128xf32>
    %85 = arith.subf %84, %73 : vector<1x8x128xf32>
    %86 = arith.addf %65, %71 : vector<1x8x128xf32>
    %87 = arith.addf %86, %73 : vector<1x8x128xf32>
    %88 = arith.subf %65, %71 : vector<1x8x128xf32>
    %89 = arith.addf %88, %73 : vector<1x8x128xf32>
    %cst_23 = arith.constant 0.000000e+00 : f32
    %90 = vector.broadcast %cst_23 : f32 to vector<1x8x128xf32>
    %91 = vector.extract_strided_slice %4 {offsets = [0, 0, 0, 0], sizes = [1, 1, 8, 128], strides = [1, 1, 1, 1]} : vector<1x8x8x128xf32> to vector<1x1x8x128xf32>
    %92 = vector.shape_cast %91 : vector<1x1x8x128xf32> to vector<1x8x128xf32>
    %cst_24 = arith.constant 0.00537634408 : f32
    %93 = vector.broadcast %cst_24 : f32 to vector<1x8x128xf32>
    %94 = arith.mulf %93, %92 : vector<1x8x128xf32>
    %95 = vector.shape_cast %42 : vector<8x128xf32> to vector<1x8x128xf32>
    %96 = arith.subf %94, %95 : vector<1x8x128xf32>
    %97 = vector.extract_strided_slice %4 {offsets = [0, 1, 0, 0], sizes = [1, 1, 8, 128], strides = [1, 1, 1, 1]} : vector<1x8x8x128xf32> to vector<1x1x8x128xf32>
    %98 = vector.shape_cast %97 : vector<1x1x8x128xf32> to vector<1x8x128xf32>
    %cst_25 = arith.constant 0.00537634408 : f32
    %99 = vector.broadcast %cst_25 : f32 to vector<1x8x128xf32>
    %100 = arith.mulf %99, %98 : vector<1x8x128xf32>
    %101 = vector.shape_cast %45 : vector<8x128xf32> to vector<1x8x128xf32>
    %102 = arith.subf %100, %101 : vector<1x8x128xf32>
    %103 = arith.subf %75, %96 : vector<1x8x128xf32>
    %104 = math.absf %103 : vector<1x8x128xf32>
    %105 = arith.addf %90, %104 : vector<1x8x128xf32>
    %106 = arith.subf %83, %102 : vector<1x8x128xf32>
    %107 = math.absf %106 : vector<1x8x128xf32>
    %108 = arith.addf %105, %107 : vector<1x8x128xf32>
    %109 = vector.extract_strided_slice %4 {offsets = [0, 2, 0, 0], sizes = [1, 1, 8, 128], strides = [1, 1, 1, 1]} : vector<1x8x8x128xf32> to vector<1x1x8x128xf32>
    %110 = vector.shape_cast %109 : vector<1x1x8x128xf32> to vector<1x8x128xf32>
    %cst_26 = arith.constant 0.00537634408 : f32
    %111 = vector.broadcast %cst_26 : f32 to vector<1x8x128xf32>
    %112 = arith.mulf %111, %110 : vector<1x8x128xf32>
    %113 = vector.shape_cast %42 : vector<8x128xf32> to vector<1x8x128xf32>
    %114 = arith.subf %112, %113 : vector<1x8x128xf32>
    %115 = vector.extract_strided_slice %4 {offsets = [0, 3, 0, 0], sizes = [1, 1, 8, 128], strides = [1, 1, 1, 1]} : vector<1x8x8x128xf32> to vector<1x1x8x128xf32>
    %116 = vector.shape_cast %115 : vector<1x1x8x128xf32> to vector<1x8x128xf32>
    %cst_27 = arith.constant 0.00537634408 : f32
    %117 = vector.broadcast %cst_27 : f32 to vector<1x8x128xf32>
    %118 = arith.mulf %117, %116 : vector<1x8x128xf32>
    %119 = vector.shape_cast %45 : vector<8x128xf32> to vector<1x8x128xf32>
    %120 = arith.subf %118, %119 : vector<1x8x128xf32>
    %121 = arith.subf %77, %114 : vector<1x8x128xf32>
    %122 = math.absf %121 : vector<1x8x128xf32>
    %123 = arith.addf %108, %122 : vector<1x8x128xf32>
    %124 = arith.subf %85, %120 : vector<1x8x128xf32>
    %125 = math.absf %124 : vector<1x8x128xf32>
    %126 = arith.addf %123, %125 : vector<1x8x128xf32>
    %127 = vector.extract_strided_slice %4 {offsets = [0, 4, 0, 0], sizes = [1, 1, 8, 128], strides = [1, 1, 1, 1]} : vector<1x8x8x128xf32> to vector<1x1x8x128xf32>
    %128 = vector.shape_cast %127 : vector<1x1x8x128xf32> to vector<1x8x128xf32>
    %cst_28 = arith.constant 0.00537634408 : f32
    %129 = vector.broadcast %cst_28 : f32 to vector<1x8x128xf32>
    %130 = arith.mulf %129, %128 : vector<1x8x128xf32>
    %131 = vector.shape_cast %42 : vector<8x128xf32> to vector<1x8x128xf32>
    %132 = arith.subf %130, %131 : vector<1x8x128xf32>
    %133 = vector.extract_strided_slice %4 {offsets = [0, 5, 0, 0], sizes = [1, 1, 8, 128], strides = [1, 1, 1, 1]} : vector<1x8x8x128xf32> to vector<1x1x8x128xf32>
    %134 = vector.shape_cast %133 : vector<1x1x8x128xf32> to vector<1x8x128xf32>
    %cst_29 = arith.constant 0.00537634408 : f32
    %135 = vector.broadcast %cst_29 : f32 to vector<1x8x128xf32>
    %136 = arith.mulf %135, %134 : vector<1x8x128xf32>
    %137 = vector.shape_cast %45 : vector<8x128xf32> to vector<1x8x128xf32>
    %138 = arith.subf %136, %137 : vector<1x8x128xf32>
    %139 = arith.subf %79, %132 : vector<1x8x128xf32>
    %140 = math.absf %139 : vector<1x8x128xf32>
    %141 = arith.addf %126, %140 : vector<1x8x128xf32>
    %142 = arith.subf %87, %138 : vector<1x8x128xf32>
    %143 = math.absf %142 : vector<1x8x128xf32>
    %144 = arith.addf %141, %143 : vector<1x8x128xf32>
    %145 = vector.extract_strided_slice %4 {offsets = [0, 6, 0, 0], sizes = [1, 1, 8, 128], strides = [1, 1, 1, 1]} : vector<1x8x8x128xf32> to vector<1x1x8x128xf32>
    %146 = vector.shape_cast %145 : vector<1x1x8x128xf32> to vector<1x8x128xf32>
    %cst_30 = arith.constant 0.00537634408 : f32
    %147 = vector.broadcast %cst_30 : f32 to vector<1x8x128xf32>
    %148 = arith.mulf %147, %146 : vector<1x8x128xf32>
    %149 = vector.shape_cast %42 : vector<8x128xf32> to vector<1x8x128xf32>
    %150 = arith.subf %148, %149 : vector<1x8x128xf32>
    %151 = vector.extract_strided_slice %4 {offsets = [0, 7, 0, 0], sizes = [1, 1, 8, 128], strides = [1, 1, 1, 1]} : vector<1x8x8x128xf32> to vector<1x1x8x128xf32>
    %152 = vector.shape_cast %151 : vector<1x1x8x128xf32> to vector<1x8x128xf32>
    %cst_31 = arith.constant 0.00537634408 : f32
    %153 = vector.broadcast %cst_31 : f32 to vector<1x8x128xf32>
    %154 = arith.mulf %153, %152 : vector<1x8x128xf32>
    %155 = vector.shape_cast %45 : vector<8x128xf32> to vector<1x8x128xf32>
    %156 = arith.subf %154, %155 : vector<1x8x128xf32>
    %157 = arith.subf %81, %150 : vector<1x8x128xf32>
    %158 = math.absf %157 : vector<1x8x128xf32>
    %159 = arith.addf %144, %158 : vector<1x8x128xf32>
    %160 = arith.subf %89, %156 : vector<1x8x128xf32>
    %161 = math.absf %160 : vector<1x8x128xf32>
    %162 = arith.addf %159, %161 : vector<1x8x128xf32>
    %cst_32 = arith.constant 1.000000e+00 : f32
    %163 = vector.broadcast %cst_32 : f32 to vector<1x8x128xf32>
    %164 = arith.subf %163, %5 : vector<1x8x128xf32>
    %cst_33 = arith.constant 1.000000e-10 : f32
    %165 = vector.broadcast %cst_33 : f32 to vector<1x8x128xf32>
    %166 = arith.addf %47, %165 : vector<1x8x128xf32>
    %cst_34 = arith.constant 1.000000e+00 : f32
    %167 = vector.broadcast %cst_34 : f32 to vector<1x8x128xf32>
    %168 = arith.subf %167, %49 : vector<1x8x128xf32>
    %cst_35 = arith.constant 1.000000e-10 : f32
    %169 = vector.broadcast %cst_35 : f32 to vector<1x8x128xf32>
    %170 = arith.addf %168, %169 : vector<1x8x128xf32>
    %171 = arith.mulf %166, %170 : vector<1x8x128xf32>
    %172 = math.log %171 : vector<1x8x128xf32>
    %173 = arith.mulf %5, %172 : vector<1x8x128xf32>
    %cst_36 = arith.constant 1.000000e+00 : f32
    %174 = vector.broadcast %cst_36 : f32 to vector<1x8x128xf32>
    %175 = arith.subf %174, %47 : vector<1x8x128xf32>
    %cst_37 = arith.constant 1.000000e-10 : f32
    %176 = vector.broadcast %cst_37 : f32 to vector<1x8x128xf32>
    %177 = arith.addf %175, %176 : vector<1x8x128xf32>
    %cst_38 = arith.constant 1.000000e-10 : f32
    %178 = vector.broadcast %cst_38 : f32 to vector<1x8x128xf32>
    %179 = arith.addf %49, %178 : vector<1x8x128xf32>
    %180 = arith.mulf %177, %179 : vector<1x8x128xf32>
    %181 = math.log %180 : vector<1x8x128xf32>
    %182 = arith.mulf %164, %181 : vector<1x8x128xf32>
    %183 = arith.addf %173, %182 : vector<1x8x128xf32>
    %cst_39 = arith.constant 0.000000e+00 : f32
    %184 = vector.broadcast %cst_39 : f32 to vector<1x8x128xf32>
    %185 = arith.subf %184, %183 : vector<1x8x128xf32>
    %186 = arith.mulf %5, %162 : vector<1x8x128xf32>
    %187 = vector.shape_cast %39 : vector<8x128xf32> to vector<1x8x128xf32>
    %188 = arith.mulf %187, %185 : vector<1x8x128xf32>
    %189 = arith.addf %186, %188 : vector<1x8x128xf32>
    %cst_40 = arith.constant dense<0.000000e+00> : vector<8x128xf32>
    %190 = vector.multi_reduction <add>, %189, %cst_40 [0] : vector<1x8x128xf32> to vector<8x128xf32>
    %c0_41 = arith.constant 0 : index
    %c0_42 = arith.constant 0 : index
    %c0_43 = arith.constant 0 : index
    %191 = vector.load %arg5[%c0_41, %c0_42, %c0_43] : memref<1x8x128xf32, #tpu.memory_space<vmem>>, vector<1x8x128xf32>
    %192 = vector.shape_cast %190 : vector<8x128xf32> to vector<1x8x128xf32>
    %193 = arith.addf %191, %192 : vector<1x8x128xf32>
    %c0_44 = arith.constant 0 : index
    %c0_45 = arith.constant 0 : index
    %c0_46 = arith.constant 0 : index
    %194 = vector.load %arg5[%c0_44, %c0_45, %c0_46] : memref<1x8x128xf32, #tpu.memory_space<vmem>>, vector<1x8x128xf32>
    tpu.vector_store %arg5[%c0_44, %c0_45, %c0_46], %193 {strides = array<i32>} : memref<1x8x128xf32, #tpu.memory_space<vmem>>, vector<1x8x128xf32>,
    return
  }
  func.func @transform_0(%arg0: i32, %arg1: i32) -> (i32, i32, i32, i32) {
    %c0_i32 = arith.constant 0 : i32
    %c0_i32_0 = arith.constant 0 : i32
    %c0_i32_1 = arith.constant 0 : i32
    return %arg0, %c0_i32, %arg1, %c0_i32_0 : i32, i32, i32, i32
  }
  func.func @transform_1(%arg0: i32, %arg1: i32) -> (i32, i32, i32, i32) {
    %c0_i32 = arith.constant 0 : i32
    %c0_i32_0 = arith.constant 0 : i32
    %c0_i32_1 = arith.constant 0 : i32
    return %arg0, %c0_i32, %arg1, %c0_i32_0 : i32, i32, i32, i32
  }
  func.func @transform_2(%arg0: i32, %arg1: i32) -> (i32, i32, i32) {
    %c0_i32 = arith.constant 0 : i32
    %c0_i32_0 = arith.constant 0 : i32
    return %arg0, %arg1, %c0_i32 : i32, i32, i32
  }
  func.func @transform_3(%arg0: i32, %arg1: i32) -> (i32, i32, i32) {
    %c0_i32 = arith.constant 0 : i32
    %c0_i32_0 = arith.constant 0 : i32
    %c0_i32_1 = arith.constant 0 : i32
    return %arg0, %c0_i32, %c0_i32_0 : i32, i32, i32
  }
}

</mosaic_0001>

<llo_original>
// kernel: wpod_loss.1
$region0: #{wpod_loss.1}
  #allocation0 [shape = 'u32[]', space=smem, size = 0x4, offset = 0x4, fixed_abs, tag = 'smem constant byte address 0x4 - core index']
  #allocation1 [shape = 'u32[144,128]{1,0:T(1,128)}', space=vmem, size = 0x12000, scoped, tag = 'internal scratch']
  %s0 = inlined_call_operand.vmem [shape: f32[2,8,8,128], index: 0, kind: input, shape index: {}]
  %s1 = inlined_call_operand.vmem [shape: f32[2,8,8,128], index: 1, kind: input, shape index: {}]
  %s2 = inlined_call_operand.vmem [shape: f32[2,8,128], index: 2, kind: input, shape index: {}]
  %s3 = inlined_call_operand.vmem [shape: f32[2,8,128], index: 3, kind: output, shape index: {}]
  %s4 = sld [smem:[#allocation0]]
  $region49: #{wpod_loss.1} parent=0
    _
  %s6 = ssub.s32 1, %s4
  %s7 = scalar_select 0, %s6, %s4
  loop: start=0, step=1, limit=4
  $region2: #{wpod_loss.1} parent=0 // loop_pre_header
    _
  $region3: #{wpod_loss.1} parent=0 // loop_header
    %s9 = sphi 0, %s13
    %p10 = scmp.ge.s32.totalorder %s9, 4
    %s16 = sphi 0, %s28
    %s17 = sphi 0, %s24
    %s18 = sphi 0, %s16
    %s19 = sphi 0, %s17
    %s20 = sphi 0, %s18
    %s21 = sphi 0, %s19
    %s33 = sphi 0, %s35
    %s36 = sphi 0, %s33
    %s37 = sphi 0, %s36
    %s53 = sphi 0, %s37
    %s61 = sphi 0, %s63
    %s64 = sphi 0, %s61
    %s65 = sphi 0, %s64
    %s81 = sphi 0, %s65
    %s89 = sphi 0, %s91
    %s92 = sphi 0, %s89
    %s93 = sphi 0, %s92
    %s109 = sphi 0, %s93
    %s115 = sphi 0, %s117
    %s118 = sphi 0, %s115
    %s119 = sphi 0, %s118
    %s135 = sphi 0, %s119
  $region4: #{wpod_loss.1} parent=0 // loop_header_branch
    %12 = sbr.rel (%p10) target = $region8
  $region5: #{wpod_loss.1} parent=0 // loop_body
    %s14 = ssub.s32 %s9, 1
    %s15 = ssub.s32 %s9, 2
    %s22 = sadd.s32 1, %s17
    %p23 = scmp.ge.s32.totalorder %s22, 1
    %s24 = scalar_select %p23, 0, %s22
    %s25 = sadd.s32 1, %s16
    %s26 = scalar_select %p23, %s25, %s16
    %p27 = scmp.ge.s32.totalorder %s26, 2
    %s28 = scalar_select %p27, 0, %s26
    %s29 = ssub.s32 %s16, %s28
    %s30 = ssub.s32 %s17, %s24
    %s31 = sor.u32 %s29, %s30
    %p32 = scmp.eq.s32.totalorder %s31, 0
    %s34 = sadd.s32 %s33, 1
    %s35 = scalar_select %p32, %s33, %s34
    %p38 = pneg %p32
    %p39 = scmp.eq.s32.totalorder %s9, 1
    %p40 = por %p38, %p39
    %p41 = scmp.ne.s32.totalorder %s33, %s36
    %p42 = scmp.eq.s32.totalorder %s9, 0
    %p43 = por %p41, %p42
    %p44 = scmp.ne.s32.totalorder %s33, %s36
    %p45 = scmp.eq.s32.totalorder %s14, 1
    %p46 = por %p44, %p45
    %p47 = scmp.ne.s32.totalorder %s36, %s37
    %p48 = scmp.eq.s32.totalorder %s14, 0
    %p49 = por %p47, %p48
    %p50 = scmp.ne.s32.totalorder %s36, %s37
    %p51 = scmp.eq.s32.totalorder %s15, 1
    %p52 = por %p50, %p51
    %p54 = scmp.ne.s32.totalorder %s37, %s53
    %p55 = scmp.eq.s32.totalorder %s15, 0
    %p56 = por %p54, %p55
    %s57 = ssub.s32 %s16, %s28
    %s58 = ssub.s32 %s17, %s24
    %s59 = sor.u32 %s57, %s58
    %p60 = scmp.eq.s32.totalorder %s59, 0
    %s62 = sadd.s32 %s61, 1
    %s63 = scalar_select %p60, %s61, %s62
    %p66 = pneg %p60
    %p67 = scmp.eq.s32.totalorder %s9, 1
    %p68 = por %p66, %p67
    %p69 = scmp.ne.s32.totalorder %s61, %s64
    %p70 = scmp.eq.s32.totalorder %s9, 0
    %p71 = por %p69, %p70
    %p72 = scmp.ne.s32.totalorder %s61, %s64
    %p73 = scmp.eq.s32.totalorder %s14, 1
    %p74 = por %p72, %p73
    %p75 = scmp.ne.s32.totalorder %s64, %s65
    %p76 = scmp.eq.s32.totalorder %s14, 0
    %p77 = por %p75, %p76
    %p78 = scmp.ne.s32.totalorder %s64, %s65
    %p79 = scmp.eq.s32.totalorder %s15, 1
    %p80 = por %p78, %p79
    %p82 = scmp.ne.s32.totalorder %s65, %s81
    %p83 = scmp.eq.s32.totalorder %s15, 0
    %p84 = por %p82, %p83
    %s85 = ssub.s32 %s16, %s28
    %s86 = ssub.s32 %s17, %s24
    %s87 = sor.u32 %s85, %s86
    %p88 = scmp.eq.s32.totalorder %s87, 0
    %s90 = sadd.s32 %s89, 1
    %s91 = scalar_select %p88, %s89, %s90
    %p94 = pneg %p88
    %p95 = scmp.eq.s32.totalorder %s9, 1
    %p96 = por %p94, %p95
    %p97 = scmp.ne.s32.totalorder %s89, %s92
    %p98 = scmp.eq.s32.totalorder %s9, 0
    %p99 = por %p97, %p98
    %p100 = scmp.ne.s32.totalorder %s89, %s92
    %p101 = scmp.eq.s32.totalorder %s14, 1
    %p102 = por %p100, %p101
    %p103 = scmp.ne.s32.totalorder %s92, %s93
    %p104 = scmp.eq.s32.totalorder %s14, 0
    %p105 = por %p103, %p104
    %p106 = scmp.ne.s32.totalorder %s92, %s93
    %p107 = scmp.eq.s32.totalorder %s15, 1
    %p108 = por %p106, %p107
    %p110 = scmp.ne.s32.totalorder %s93, %s109
    %p111 = scmp.eq.s32.totalorder %s15, 0
    %p112 = por %p110, %p111
    %s113 = ssub.s32 %s16, %s28
    %p114 = scmp.eq.s32.totalorder %s113, 0
    %s116 = sadd.s32 %s115, 1
    %s117 = scalar_select %p114, %s115, %s116
    %p120 = pneg %p114
    %p121 = scmp.eq.s32.totalorder %s9, 1
    %p122 = por %p120, %p121
    %p123 = scmp.ne.s32.totalorder %s115, %s118
    %p124 = scmp.eq.s32.totalorder %s9, 0
    %p125 = por %p123, %p124
    %p126 = scmp.ne.s32.totalorder %s115, %s118
    %p127 = scmp.eq.s32.totalorder %s14, 1
    %p128 = por %p126, %p127
    %p129 = scmp.ne.s32.totalorder %s118, %s119
    %p130 = scmp.eq.s32.totalorder %s14, 0
    %p131 = por %p129, %p130
    %p132 = scmp.ne.s32.totalorder %s118, %s119
    %p133 = scmp.eq.s32.totalorder %s15, 1
    %p134 = por %p132, %p133
    %p136 = scmp.ne.s32.totalorder %s119, %s135
    %p137 = scmp.eq.s32.totalorder %s15, 0
    %p138 = por %p136, %p137
    %p139 = scmp.le.s32.totalorder 1, %s9
    %p140 = scmp.lt.s32.totalorder %s9, 3
    %p141 = pnand %p139, %p140
    %p142 = pneg %p141
    // Predicated region
    $region9: #{wpod_loss.1} parent=5 // pred_check
      _
    $region10: #{wpod_loss.1} parent=5 // pred_check_branch
      %144 = sbr.rel (%p141) target = $region12
    $region11: #{wpod_loss.1} parent=5 // pred_region
      %s145 = ssub.s32 %s9, 1
    $region12: #{wpod_loss.1} parent=5 // pred_fallthru
      _
    %p146 = scmp.lt.s32.totalorder %s9, 2
    // Predicated region
    $region13: #{wpod_loss.1} parent=5 // pred_check
      %p147 = pneg %p146
    $region14: #{wpod_loss.1} parent=5 // pred_check_branch
      %149 = sbr.rel (%p147) target = $region16
    $region15: #{wpod_loss.1} parent=5 // pred_region
      // Predicated region
      $region17: #{wpod_loss.1} parent=15 // pred_check
        %p150 = pneg %p43
      $region18: #{wpod_loss.1} parent=15 // pred_check_branch
        %152 = sbr.rel (%p150) target = $region20
      $region19: #{wpod_loss.1} parent=15 // pred_region
        %p153 = scmp.lt.s32.totalorder %s16, 1
        %s154 = scalar_select %p153, %s16, 1
        %p155 = scmp.lt.s32.totalorder %s17, 0
        %s156 = scalar_select %p155, %s17, 0
        %s157 = smul.addr %s154, 8
        %s158 = sadd.s32 %s156, %s157
        %s159 = smul.addr %s158, 8
        %s160 = scalar_lea.vmem %s0, %s159
      $region20: #{wpod_loss.1} parent=15 // pred_fallthru
        _
      // Predicated region
      $region21: #{wpod_loss.1} parent=15 // pred_check
        %p161 = pneg %p71
      $region22: #{wpod_loss.1} parent=15 // pred_check_branch
        %163 = sbr.rel (%p161) target = $region24
      $region23: #{wpod_loss.1} parent=15 // pred_region
        %p164 = scmp.lt.s32.totalorder %s16, 1
        %s165 = scalar_select %p164, %s16, 1
        %p166 = scmp.lt.s32.totalorder %s17, 0
        %s167 = scalar_select %p166, %s17, 0
        %s168 = smul.addr %s165, 8
        %s169 = sadd.s32 %s167, %s168
        %s170 = smul.addr %s169, 8
        %s171 = scalar_lea.vmem %s1, %s170
      $region24: #{wpod_loss.1} parent=15 // pred_fallthru
        _
      // Predicated region
      $region25: #{wpod_loss.1} parent=15 // pred_check
        %p172 = pneg %p99
      $region26: #{wpod_loss.1} parent=15 // pred_check_branch
        %174 = sbr.rel (%p172) target = $region28
      $region27: #{wpod_loss.1} parent=15 // pred_region
        %p175 = scmp.lt.s32.totalorder %s16, 1
        %s176 = scalar_select %p175, %s16, 1
        %p177 = scmp.lt.s32.totalorder %s17, 0
        %s178 = scalar_select %p177, %s17, 0
        %s179 = sadd.s32 %s178, %s176
        %s180 = smul.addr %s179, 8
        %s181 = scalar_lea.vmem %s2, %s180
      $region28: #{wpod_loss.1} parent=15 // pred_fallthru
        _
    $region16: #{wpod_loss.1} parent=5 // pred_fallthru
      _
    %p182 = scmp.le.s32.totalorder 1, %s9
    %p183 = scmp.lt.s32.totalorder %s9, 3
    %p184 = pnand %p182, %p183
    %p185 = pneg %p184
    // Predicated region
    $region29: #{wpod_loss.1} parent=5 // pred_check
      _
    $region30: #{wpod_loss.1} parent=5 // pred_check_branch
      %187 = sbr.rel (%p184) target = $region32
    $region31: #{wpod_loss.1} parent=5 // pred_region
      %s188 = ssub.s32 %s9, 1
      %p189 = scmp.lt.s32.totalorder %s18, 1
      %s190 = scalar_select %p189, %s18, 1
      %p191 = scmp.lt.s32.totalorder %s19, 0
      %s192 = scalar_select %p191, %s19, 0
      %s193 = smul.addr %s190, 8
      %s194 = sadd.s32 %s192, %s193
      %s195 = smul.addr %s194, 8
      %s196 = scalar_lea.vmem %s0, %s195
      %p197 = pneg %p49
      %p198 = pneg %p46
      %p199 = scmp.lt.s32.totalorder %s18, 1
      %s200 = scalar_select %p199, %s18, 1
      %p201 = scmp.lt.s32.totalorder %s19, 0
      %s202 = scalar_select %p201, %s19, 0
      %s203 = smul.addr %s200, 8
      %s204 = sadd.s32 %s202, %s203
      %s205 = smul.addr %s204, 8
      %s206 = scalar_lea.vmem %s1, %s205
      %p207 = pneg %p77
      %p208 = pneg %p74
      %p209 = scmp.lt.s32.totalorder %s18, 1
      %s210 = scalar_select %p209, %s18, 1
      %p211 = scmp.lt.s32.totalorder %s19, 0
      %s212 = scalar_select %p211, %s19, 0
      %s213 = sadd.s32 %s212, %s210
      %s214 = smul.addr %s213, 8
      %s215 = scalar_lea.vmem %s2, %s214
      %p216 = pneg %p105
      %p217 = pneg %p102
      %p218 = pneg %p131
      %p219 = pneg %p128
      %p220 = scmp.lt.s32.totalorder %s18, 1
      %s221 = scalar_select %p220, %s18, 1
      %s222 = smul.addr %s221, 8
      %s223 = scalar_lea.vmem %s3, %s222
      %p224 = scmp.lt.s32.totalorder %s18, 1
      %s225 = scalar_select %p224, %s18, 1
      %p226 = scmp.lt.s32.totalorder %s19, 0
      %s227 = scalar_select %p226, %s19, 0
      %s228 = smul.addr %s225, 8
      %s229 = sadd.s32 %s227, %s228
      %s230 = smul.addr %s229, 8
      %s231 = scalar_lea.vmem %s0, %s230
      %p232 = scmp.lt.s32.totalorder %s18, 1
      %s233 = scalar_select %p232, %s18, 1
      %p234 = scmp.lt.s32.totalorder %s19, 0
      %s235 = scalar_select %p234, %s19, 0
      %s236 = smul.addr %s233, 8
      %s237 = sadd.s32 %s235, %s236
      %s238 = smul.addr %s237, 8
      %s239 = scalar_lea.vmem %s1, %s238
      %p240 = scmp.lt.s32.totalorder %s18, 1
      %s241 = scalar_select %p240, %s18, 1
      %p242 = scmp.lt.s32.totalorder %s19, 0
      %s243 = scalar_select %p242, %s19, 0
      %s244 = sadd.s32 %s243, %s241
      %s245 = smul.addr %s244, 8
      %s246 = scalar_lea.vmem %s2, %s245
      %p247 = scmp.lt.s32.totalorder %s18, 1
      %s248 = scalar_select %p247, %s18, 1
      %s249 = smul.addr %s248, 8
      %s250 = scalar_lea.vmem %s3, %s249
      %p251 = scmp.eq.s32.totalorder %s19, 0
      // Predicated region
      $region33: #{wpod_loss.1} parent=31 // pred_check
        %p252 = pneg %p251
      $region34: #{wpod_loss.1} parent=31 // pred_check_branch
        %254 = sbr.rel (%p252) target = $region36
      $region35: #{wpod_loss.1} parent=31 // pred_region
        %255 = vst [vmem:[%s250] sm:$0xff] 0.0
      $region36: #{wpod_loss.1} parent=31 // pred_fallthru
        _
      %v256 = vld [vmem:[%s231] sm:$0xff]
      %v257 = vld [vmem:[%s231 + $0x8] sm:$0xff]
      %v258 = vld [vmem:[%s231 + $0x10] sm:$0xff]
      %v259 = vld [vmem:[%s231 + $0x18] sm:$0xff]
      %v260 = vld [vmem:[%s231 + $0x20] sm:$0xff]
      %v261 = vld [vmem:[%s231 + $0x28] sm:$0xff]
      %v262 = vld [vmem:[%s231 + $0x30] sm:$0xff]
      %v263 = vld [vmem:[%s231 + $0x38] sm:$0xff]
      %v264 = vld [vmem:[%s239] sm:$0xff]
      %v265 = vld [vmem:[%s239 + $0x8] sm:$0xff]
      %v266 = vld [vmem:[%s239 + $0x10] sm:$0xff]
      %v267 = vld [vmem:[%s239 + $0x18] sm:$0xff]
      %v268 = vld [vmem:[%s239 + $0x20] sm:$0xff]
      %v269 = vld [vmem:[%s239 + $0x28] sm:$0xff]
      %v270 = vld [vmem:[%s239 + $0x30] sm:$0xff]
      %v271 = vld [vmem:[%s239 + $0x38] sm:$0xff]
      %v272 = vld [vmem:[%s246] sm:$0xff]
      %v273 = vlaneseq
      %v274 = vshrl.u32 %v273, 7
      %v275 = vlaneseq
      %v276 = vand.u32 %v275, 127
      %s277 = smul.u32 %s19, 8
      %v278 = vstv %s277
      %v279 = vadd.s32 %v278, %v274
      %v280 = vmul.u32 %v279, 128
      %v281 = vadd.s32 %v280, %v276
      %v282 = vcvt.s32.f32 %v281
      %v283 = vmul.f32 %v282, 0.0625
      %v284 = vfloor.f32 %v283
      %v285 = vcvt.f32.s32.to.zero.pseudo %v284
      %v286 = vmul.u32 %v285, 16
      %vm287 = vcmp.gt.s32.totalorder %v286, %v281
      %v288 = vsub.s32 %v285, 1
      %v289 = vsel %vm287, %v288, %v285
      %v290 = vadd.s32 %v289, 1
      %v291 = vmul.u32 %v290, 16
      %vm292 = vcmp.le.s32.totalorder %v291, %v281
      %v293 = vsel %vm292, %v290, %v289
      %v294 = vmul.u32 %v293, 16
      %v295 = vsub.s32 %v281, %v294
      %vm296 = vcmp.lt.s32.totalorder %v281, 256
      %v297 = vsel %vm296, 1, 0
      %v298 = vcvt.s32.f32 %v297
      %v299 = vcvt.s32.f32 %v295
      %v300 = vmul.f32 %v299, 0.12903225
      %v301 = vcvt.s32.f32 %v293
      %v302 = vmul.f32 %v301, 0.12903225
      %v303 = vmax.f32 %v258, 0.0
      %v304 = vmax.f32 %v261, 0.0
      %v305 = vmul.f32 %v303, 0.5
      %v306 = vmul.f32 %v259, 0.5
      %v307 = vmul.f32 %v260, 0.5
      %v308 = vmul.f32 %v304, 0.5
      %v309 = vsub.f32 %v262, %v305
      %v310 = vsub.f32 %v309, %v306
      %v311 = vadd.f32 %v262, %v305
      %v312 = vsub.f32 %v311, %v306
      %v313 = vadd.f32 %v311, %v306
      %v314 = vadd.f32 %v309, %v306
      %v315 = vsub.f32 %v263, %v307
      %v316 = vsub.f32 %v315, %v308
      %v317 = vadd.f32 %v263, %v307
      %v318 = vsub.f32 %v317, %v308
      %v319 = vadd.f32 %v317, %v308
      %v320 = vadd.f32 %v315, %v308
      %v321 = vmul.f32 %v264, 0.005376344
      %v322 = vsub.f32 %v321, %v300
      %v323 = vmul.f32 %v265, 0.005376344
      %v324 = vsub.f32 %v323, %v302
      %v325 = vsub.f32 %v310, %v322
      %v326 = vand.u32 2147483647, %v325
      %v327 = vadd.f32 %v326, 0.0
      %v328 = vsub.f32 %v316, %v324
      %v329 = vand.u32 2147483647, %v328
      %v330 = vadd.f32 %v327, %v329
      %v331 = vmul.f32 %v266, 0.005376344
      %v332 = vsub.f32 %v331, %v300
      %v333 = vmul.f32 %v267, 0.005376344
      %v334 = vsub.f32 %v333, %v302
      %v335 = vsub.f32 %v312, %v332
      %v336 = vand.u32 2147483647, %v335
      %v337 = vadd.f32 %v330, %v336
      %v338 = vsub.f32 %v318, %v334
      %v339 = vand.u32 2147483647, %v338
      %v340 = vadd.f32 %v337, %v339
      %v341 = vmul.f32 %v268, 0.005376344
      %v342 = vsub.f32 %v341, %v300
      %v343 = vmul.f32 %v269, 0.005376344
      %v344 = vsub.f32 %v343, %v302
      %v345 = vsub.f32 %v313, %v342
      %v346 = vand.u32 2147483647, %v345
      %v347 = vadd.f32 %v340, %v346
      %v348 = vsub.f32 %v319, %v344
      %v349 = vand.u32 2147483647, %v348
      %v350 = vadd.f32 %v347, %v349
      %v351 = vmul.f32 %v270, 0.005376344
      %v352 = vsub.f32 %v351, %v300
      %v353 = vmul.f32 %v271, 0.005376344
      %v354 = vsub.f32 %v353, %v302
      %v355 = vsub.f32 %v314, %v352
      %v356 = vand.u32 2147483647, %v355
      %v357 = vadd.f32 %v350, %v356
      %v358 = vsub.f32 %v320, %v354
      %v359 = vand.u32 2147483647, %v358
      %v360 = vadd.f32 %v357, %v359
      %v361 = vsub.f32 1.0, %v272
      %v362 = vadd.f32 %v256, 1e-10
      %v363 = vsub.f32 1.0, %v257
      %v364 = vadd.f32 %v363, 1e-10
      %v365 = vmul.f32 %v362, %v364
      %v366 = vlog2.pop %v365
      %v367 = vmul.f32 %v366, 0.6931472
      %v368 = vmul.f32 %v272, %v367
      %v369 = vsub.f32 1.0, %v256
      %v370 = vadd.f32 %v369, 1e-10
      %v371 = vadd.f32 %v257, 1e-10
      %v372 = vmul.f32 %v370, %v371
      %v373 = vlog2.pop %v372
      %v374 = vmul.f32 %v373, 0.6931472
      %v375 = vmul.f32 %v361, %v374
      %v376 = vadd.f32 %v368, %v375
      %v377 = vsub.f32 0.0, %v376
      %v378 = vmul.f32 %v272, %v360
      %v379 = vmul.f32 %v298, %v377
      %v380 = vadd.f32 %v378, %v379
      %v381 = vadd.f32 %v380, 0.0
      %v382 = vld [vmem:[%s250] sm:$0xff]
      %v383 = vadd.f32 %v382, %v381
      %384 = vst [vmem:[%s250] sm:$0xff] %v383
      %p385 = scmp.lt.s32.totalorder %s18, 1
      %s386 = scalar_select %p385, %s18, 1
      %s387 = smul.addr %s386, 8
      %s388 = scalar_lea.vmem %s3, %s387
      // Predicated region
      $region37: #{wpod_loss.1} parent=31 // pred_check
        %p389 = pneg %p128
      $region38: #{wpod_loss.1} parent=31 // pred_check_branch
        %391 = sbr.rel (%p389) target = $region40
      $region39: #{wpod_loss.1} parent=31 // pred_region
        _
      $region40: #{wpod_loss.1} parent=31 // pred_fallthru
        _
    $region32: #{wpod_loss.1} parent=5 // pred_fallthru
      _
    %p392 = scmp.le.s32.totalorder 2, %s9
    // Predicated region
    $region41: #{wpod_loss.1} parent=5 // pred_check
      %p393 = pneg %p392
    $region42: #{wpod_loss.1} parent=5 // pred_check_branch
      %395 = sbr.rel (%p393) target = $region44
    $region43: #{wpod_loss.1} parent=5 // pred_region
      %s396 = ssub.s32 %s9, 2
      // Predicated region
      $region45: #{wpod_loss.1} parent=43 // pred_check
        %p397 = pneg %p134
      $region46: #{wpod_loss.1} parent=43 // pred_check_branch
        %399 = sbr.rel (%p397) target = $region48
      $region47: #{wpod_loss.1} parent=43 // pred_region
        %p400 = scmp.lt.s32.totalorder %s20, 1
        %s401 = scalar_select %p400, %s20, 1
        %s402 = smul.addr %s401, 8
        %s403 = scalar_lea.vmem %s3, %s402
      $region48: #{wpod_loss.1} parent=43 // pred_fallthru
        _
    $region44: #{wpod_loss.1} parent=5 // pred_fallthru
      _
  $region6: #{wpod_loss.1} parent=0 // loop_footer
    %s13 = sadd.s32 1, %s9
  $region7: #{wpod_loss.1} parent=0 // loop_footer_branch
    %8 = sbr.rel target = $region3
  $region8: #{wpod_loss.1} parent=0 // loop_exit
    _

</llo_original>
